<compile_context>
chip_gen: v5e
topology: v5e:2x2
jax: 0.10.0
libtpu: 0.0.40
codegen_flags: <defaults>
</compile_context>

<pallas_src>
import jax
import jax.numpy as jnp
from jax.experimental import pallas as pl
from jax.experimental.pallas import tpu as pltpu

K_IN = 28 * 28   # 784
K_PAD = 896      # 7 * 128: lane-dense K for the first matmul
HID = 256
LANE = 128
MAX_TM = 512     # batch-tile rows per grid step (x tile @ bf16 = 896 KiB, 2x-buffered)


def _round_up(n, m):
    return ((n + m - 1) // m) * m


def mlp_kernel(x_ref, w1_ref, b1_ref, w2_ref, b2_ref, w3_ref, b3_ref, out_ref):
    # dense1 + ReLU  (bf16 operands, f32 accumulation on the MXU)
    h1 = jnp.dot(x_ref[...], w1_ref[...], preferred_element_type=jnp.float32)
    h1 = jnp.maximum(h1 + b1_ref[...], 0.0)
    # dense2 + ReLU
    h2 = jnp.dot(h1.astype(jnp.bfloat16), w2_ref[...], preferred_element_type=jnp.float32)
    h2 = jnp.maximum(h2 + b2_ref[...], 0.0)
    # classifier (no activation); zero-padded output lanes come out exactly 0
    out = jnp.dot(h2.astype(jnp.bfloat16), w3_ref[...], preferred_element_type=jnp.float32)
    out_ref[...] = (out + b3_ref[...]).astype(out_ref.dtype)


def baseline_model_forward(x, params, task_id=None):
    """x: (B, 1, 28, 28) or (B, 784). Returns (B, output_size) float32 logits."""
    # TODO(synk): task_id is accepted but unused, matching the reference forward().
    w1, b1, w2, b2, w3, b3 = params
    d_out = w3.shape[1]
    n_pad = _round_up(d_out, LANE)

    B = x.shape[0]
    x2d = x.reshape(B, K_IN).astype(jnp.bfloat16)

    # ---- operand prep (cheap; fused/cached by XLA when this wrapper is jitted) ----
    # bf16 weights, zero-padded to lane-dense shapes; biases stay f32 (added post-accum).
    w1p = jnp.pad(w1.astype(jnp.bfloat16), ((0, K_PAD - K_IN), (0, 0)))
    w2p = w2.astype(jnp.bfloat16)
    w3p = jnp.pad(w3.astype(jnp.bfloat16), ((0, 0), (0, n_pad - d_out)))
    b1p = b1.reshape(1, HID).astype(jnp.float32)
    b2p = b2.reshape(1, HID).astype(jnp.float32)
    b3p = jnp.pad(b3.reshape(1, d_out).astype(jnp.float32), ((0, 0), (0, n_pad - d_out)))

    # Batch tiling: tm rows per grid step; pad B so every tile is full (avoids masked stores).
    tm = min(MAX_TM, _round_up(B, 8))
    b_pad = _round_up(B, tm)
    xp = jnp.pad(x2d, ((0, b_pad - B), (0, K_PAD - K_IN)))

    # Weights/biases: constant block index -> fetched once, stay VMEM-resident across tiles.
    const = lambda shape: pl.BlockSpec(shape, lambda i: (0, 0))

    out_padded = pl.pallas_call(
        mlp_kernel,
        out_shape=jax.ShapeDtypeStruct((b_pad, n_pad), jnp.float32),
        grid=(b_pad // tm,),
        in_specs=[
            pl.BlockSpec((tm, K_PAD), lambda i: (i, 0)),   # x tile (pipelined over batch)
            const((K_PAD, HID)),
            const((1, HID)),
            const((HID, HID)),
            const((1, HID)),
            const((HID, n_pad)),
            const((1, n_pad)),
        ],
        out_specs=pl.BlockSpec((tm, n_pad), lambda i: (i, 0)),
        compiler_params=pltpu.CompilerParams(
            # Batch tiles are independent -> lets the batch axis shard across both TCs on v7x.
            dimension_semantics=("parallel",),
        ),
    )(xp, w1p, b1p, w2p, b2p, w3p, b3p)

    # Slice off batch padding and the zero-padded logit columns.
    return out_padded[:B, :d_out]


def init_params(key, output_size=10):
    """Deterministic synthetic parameters matching the module's layer shapes (W stored (in, out))."""
    k1, k2, k3, k4, k5, k6 = jax.random.split(key, 6)
    scale1 = 1.0 / jnp.sqrt(784.0)
    scale2 = 1.0 / jnp.sqrt(256.0)
    w1 = jax.random.uniform(k1, (784, 256), jnp.float32, -scale1, scale1)
    b1 = jax.random.uniform(k2, (256,), jnp.float32, -scale1, scale1)
    w2 = jax.random.uniform(k3, (256, 256), jnp.float32, -scale2, scale2)
    b2 = jax.random.uniform(k4, (256,), jnp.float32, -scale2, scale2)
    w3 = jax.random.uniform(k5, (256, output_size), jnp.float32, -scale2, scale2)
    b3 = jax.random.uniform(k6, (output_size,), jnp.float32, -scale2, scale2)
    return (w1, b1, w2, b2, w3, b3)


if __name__ == "__main__":
    key = jax.random.PRNGKey(0)
    kx, kp = jax.random.split(key)

    output_size = 10
    batch = 8
    x = jax.random.normal(kx, (batch, 1, 28, 28), jnp.float32)  # MNIST-like NCHW
    params = init_params(kp, output_size)

    out = baseline_model_forward(x, params, task_id=0)
    out = jax.block_until_ready(out)

    # Sanity check against a plain-JAX reference that mirrors the kernel's bf16 operand rounding
    # (weights and activations rounded to bf16, f32 accumulation).
    w1, b1, w2, b2, w3, b3 = params
    bf = lambda a: a.astype(jnp.bfloat16).astype(jnp.float32)
    xr = bf(x.reshape(batch, -1))
    h1 = jnp.maximum(xr @ bf(w1) + b1, 0.0)
    h2 = jnp.maximum(bf(h1) @ bf(w2) + b2, 0.0)
    ref = bf(h2) @ bf(w3) + b3

    assert out.shape == (batch, output_size)
    assert jnp.allclose(out, ref, atol=5e-3, rtol=5e-3), float(jnp.max(jnp.abs(out - ref)))

    print("KERNEL_OK")
</pallas_src>

<mosaic_0001>
module attributes {stable_mosaic.version = 11 : i64} {
  func.func @mlp_kernel(%arg0: i32, %arg1: memref<8x896xbf16, #tpu.memory_space<vmem>>, %arg2: memref<896x256xbf16, #tpu.memory_space<vmem>>, %arg3: memref<1x256xf32, #tpu.memory_space<vmem>>, %arg4: memref<256x256xbf16, #tpu.memory_space<vmem>>, %arg5: memref<1x256xf32, #tpu.memory_space<vmem>>, %arg6: memref<256x128xbf16, #tpu.memory_space<vmem>>, %arg7: memref<1x128xf32, #tpu.memory_space<vmem>>, %arg8: memref<8x128xf32, #tpu.memory_space<vmem>>) attributes {dimension_semantics = [#tpu.dimension_semantics<parallel>], iteration_bounds = array<i64: 1>, scalar_prefetch = 0 : i64, scratch_operands = 0 : i64, tpu.core_type = #tpu.core_type<tc>, window_params = [{transform_indices = @transform_0, window_bounds = array<i64: 8, 896>}, {pipeline_mode = #tpu.pipeline_mode<synchronous>, transform_indices = @transform_1, window_bounds = array<i64: 896, 256>}, {pipeline_mode = #tpu.pipeline_mode<synchronous>, transform_indices = @transform_2, window_bounds = array<i64: 1, 256>}, {pipeline_mode = #tpu.pipeline_mode<synchronous>, transform_indices = @transform_3, window_bounds = array<i64: 256, 256>}, {pipeline_mode = #tpu.pipeline_mode<synchronous>, transform_indices = @transform_4, window_bounds = array<i64: 1, 256>}, {pipeline_mode = #tpu.pipeline_mode<synchronous>, transform_indices = @transform_5, window_bounds = array<i64: 256, 128>}, {pipeline_mode = #tpu.pipeline_mode<synchronous>, transform_indices = @transform_6, window_bounds = array<i64: 1, 128>}, {transform_indices = @transform_7, window_bounds = array<i64: 8, 128>}]} {
    %c0 = arith.constant 0 : index
    %c0_0 = arith.constant 0 : index
    %0 = vector.load %arg1[%c0, %c0_0] : memref<8x896xbf16, #tpu.memory_space<vmem>>, vector<8x896xbf16>
    %c0_1 = arith.constant 0 : index
    %c0_2 = arith.constant 0 : index
    %1 = vector.load %arg2[%c0_1, %c0_2] : memref<896x256xbf16, #tpu.memory_space<vmem>>, vector<896x256xbf16>
    %cst = arith.constant dense<0.000000e+00> : vector<8x256xf32>
    %2 = tpu.matmul %0, %1, %cst {dimension_numbers = #tpu.dot_dimension_numbers<[1], [0], [0], [1], [0, 0, 1, 1], [], []>} : vector<8x896xbf16>, vector<896x256xbf16>, vector<8x256xf32> -> vector<8x256xf32>
    %c0_3 = arith.constant 0 : index
    %c0_4 = arith.constant 0 : index
    %3 = vector.load %arg3[%c0_3, %c0_4] : memref<1x256xf32, #tpu.memory_space<vmem>>, vector<1x256xf32>
    %4 = vector.broadcast %3 : vector<1x256xf32> to vector<8x256xf32>
    %5 = arith.addf %2, %4 : vector<8x256xf32>
    %cst_5 = arith.constant 0.000000e+00 : f32
    %6 = vector.broadcast %cst_5 : f32 to vector<8x256xf32>
    %7 = arith.maximumf %5, %6 : vector<8x256xf32>
    %8 = arith.truncf %7 : vector<8x256xf32> to vector<8x256xbf16>
    %c0_6 = arith.constant 0 : index
    %c0_7 = arith.constant 0 : index
    %9 = vector.load %arg4[%c0_6, %c0_7] : memref<256x256xbf16, #tpu.memory_space<vmem>>, vector<256x256xbf16>
    %cst_8 = arith.constant dense<0.000000e+00> : vector<8x256xf32>
    %10 = tpu.matmul %8, %9, %cst_8 {dimension_numbers = #tpu.dot_dimension_numbers<[1], [0], [0], [1], [0, 0, 1, 1], [], []>} : vector<8x256xbf16>, vector<256x256xbf16>, vector<8x256xf32> -> vector<8x256xf32>
    %c0_9 = arith.constant 0 : index
    %c0_10 = arith.constant 0 : index
    %11 = vector.load %arg5[%c0_9, %c0_10] : memref<1x256xf32, #tpu.memory_space<vmem>>, vector<1x256xf32>
    %12 = vector.broadcast %11 : vector<1x256xf32> to vector<8x256xf32>
    %13 = arith.addf %10, %12 : vector<8x256xf32>
    %cst_11 = arith.constant 0.000000e+00 : f32
    %14 = vector.broadcast %cst_11 : f32 to vector<8x256xf32>
    %15 = arith.maximumf %13, %14 : vector<8x256xf32>
    %16 = arith.truncf %15 : vector<8x256xf32> to vector<8x256xbf16>
    %c0_12 = arith.constant 0 : index
    %c0_13 = arith.constant 0 : index
    %17 = vector.load %arg6[%c0_12, %c0_13] : memref<256x128xbf16, #tpu.memory_space<vmem>>, vector<256x128xbf16>
    %cst_14 = arith.constant dense<0.000000e+00> : vector<8x128xf32>
    %18 = tpu.matmul %16, %17, %cst_14 {dimension_numbers = #tpu.dot_dimension_numbers<[1], [0], [0], [1], [0, 0, 1, 1], [], []>} : vector<8x256xbf16>, vector<256x128xbf16>, vector<8x128xf32> -> vector<8x128xf32>
    %c0_15 = arith.constant 0 : index
    %c0_16 = arith.constant 0 : index
    %19 = vector.load %arg7[%c0_15, %c0_16] : memref<1x128xf32, #tpu.memory_space<vmem>>, vector<1x128xf32>
    %20 = vector.broadcast %19 : vector<1x128xf32> to vector<8x128xf32>
    %21 = arith.addf %18, %20 : vector<8x128xf32>
    %c0_17 = arith.constant 0 : index
    %c0_18 = arith.constant 0 : index
    %22 = vector.load %arg8[%c0_17, %c0_18] : memref<8x128xf32, #tpu.memory_space<vmem>>, vector<8x128xf32>
    tpu.vector_store %arg8[%c0_17, %c0_18], %21 {strides = array<i32>} : memref<8x128xf32, #tpu.memory_space<vmem>>, vector<8x128xf32>,
    return
  }
  func.func @transform_0(%arg0: i32) -> (i32, i32) {
    %c0_i32 = arith.constant 0 : i32
    %c0_i32_0 = arith.constant 0 : i32
    return %arg0, %c0_i32 : i32, i32
  }
  func.func @transform_1(%arg0: i32) -> (i32, i32) {
    %c0_i32 = arith.constant 0 : i32
    %c0_i32_0 = arith.constant 0 : i32
    %c0_i32_1 = arith.constant 0 : i32
    return %c0_i32, %c0_i32_0 : i32, i32
  }
  func.func @transform_2(%arg0: i32) -> (i32, i32) {
    %c0_i32 = arith.constant 0 : i32
    %c0_i32_0 = arith.constant 0 : i32
    %c0_i32_1 = arith.constant 0 : i32
    return %c0_i32, %c0_i32_0 : i32, i32
  }
  func.func @transform_3(%arg0: i32) -> (i32, i32) {
    %c0_i32 = arith.constant 0 : i32
    %c0_i32_0 = arith.constant 0 : i32
    %c0_i32_1 = arith.constant 0 : i32
    return %c0_i32, %c0_i32_0 : i32, i32
  }
  func.func @transform_4(%arg0: i32) -> (i32, i32) {
    %c0_i32 = arith.constant 0 : i32
    %c0_i32_0 = arith.constant 0 : i32
    %c0_i32_1 = arith.constant 0 : i32
    return %c0_i32, %c0_i32_0 : i32, i32
  }
  func.func @transform_5(%arg0: i32) -> (i32, i32) {
    %c0_i32 = arith.constant 0 : i32
    %c0_i32_0 = arith.constant 0 : i32
    %c0_i32_1 = arith.constant 0 : i32
    return %c0_i32, %c0_i32_0 : i32, i32
  }
  func.func @transform_6(%arg0: i32) -> (i32, i32) {
    %c0_i32 = arith.constant 0 : i32
    %c0_i32_0 = arith.constant 0 : i32
    %c0_i32_1 = arith.constant 0 : i32
    return %c0_i32, %c0_i32_0 : i32, i32
  }
  func.func @transform_7(%arg0: i32) -> (i32, i32) {
    %c0_i32 = arith.constant 0 : i32
    %c0_i32_0 = arith.constant 0 : i32
    return %arg0, %c0_i32 : i32, i32
  }
}

</mosaic_0001>

<llo_original>
// kernel: tpu_custom_call.1
$region0: #{tpu_custom_call.1}
  #allocation0 [shape = 'u32[]', space=smem, size = 0x4, offset = 0x4, fixed_abs, tag = 'smem constant byte address 0x4 - core index']
  #allocation1 [shape = 'u32[72,128]{1,0:T(1,128)}', space=vmem, size = 0x9000, scoped, tag = 'internal scratch']
  %s0 = inlined_call_operand.hbm [shape: bf16[8,896], index: 0, kind: input, shape index: {}]
  %s1 = inlined_call_operand.hbm [shape: bf16[896,256], index: 1, kind: input, shape index: {}]
  %s2 = inlined_call_operand.hbm [shape: f32[1,256], index: 2, kind: input, shape index: {}]
  %s3 = inlined_call_operand.hbm [shape: bf16[256,256], index: 3, kind: input, shape index: {}]
  %s4 = inlined_call_operand.vmem [shape: f32[1,256], index: 4, kind: input, shape index: {}]
  %s5 = inlined_call_operand.hbm [shape: bf16[256,128], index: 5, kind: input, shape index: {}]
  %s6 = inlined_call_operand.vmem [shape: f32[1,128], index: 6, kind: input, shape index: {}]
  %s7 = inlined_call_operand.hbm [shape: f32[8,128], index: 7, kind: output, shape index: {}]
  %s8 = sld [smem:[#allocation0]]
  $region58: #{tpu_custom_call.1} parent=0
    _
  %s10 = ssub.s32 1, %s8
  %s11 = scalar_select 0, %s10, %s8
  $region1: #{tpu_custom_call.1} parent=0
    #allocation2 [shape = 'u8[14336]{0}', space=vmem, size = 0x3800, scoped, tag = 'input window, operand 0, single buffered']
    #allocation3 [shape = 's32[1]{0}', space=sflag, size = 0x4, scoped, tag = 'scoped memory for tpu_custom_call.1']
    #allocation4 [shape = 's32[1]{0}', space=sflag, size = 0x4, scoped, tag = 'scoped memory for tpu_custom_call.1']
    #allocation5 [shape = 'u8[458752]{0}', space=vmem, size = 0x70000, scoped, tag = 'input window, operand 1, single buffered']
    #allocation6 [shape = 's32[1]{0}', space=sflag, size = 0x4, scoped, tag = 'scoped memory for tpu_custom_call.1']
    #allocation7 [shape = 'u8[1024]{0}', space=vmem, size = 0x400, scoped, tag = 'input window, operand 2, single buffered']
    #allocation8 [shape = 'u8[131072]{0}', space=vmem, size = 0x20000, scoped, tag = 'input window, operand 3, single buffered']
    #allocation9 [shape = 's32[1]{0}', space=sflag, size = 0x4, scoped, tag = 'scoped memory for tpu_custom_call.1']
    #allocation10 [shape = 'u8[65536]{0}', space=vmem, size = 0x10000, scoped, tag = 'input window, operand 5, single buffered']
    #allocation11 [shape = 'u8[4096]{0}', space=vmem, size = 0x1000, scoped, tag = 'output window, operand 0, single buffered']
    %12 = vsyncpa [#allocation3], 0
    %13 = vsyncpa [#allocation6], 0
    %14 = vsyncpa [#allocation9], 0
    %15 = vsyncpa [#allocation4], 0
    // Predicated region
    $region2: #{tpu_custom_call.1} parent=1 // pred_check
      _
    $region3: #{tpu_custom_call.1} parent=1 // pred_check_branch
      %17 = sbr.rel (0) target = $region5
    $region4: #{tpu_custom_call.1} parent=1 // pred_region
      %19 = vsyncadd [#allocation3], 0
      %s21 = sshll.u32 %s0, 4
      %s22 = int_to_ptr.hbm [resolvable:$true] %s21
      %s23 = sshll.u32 [#allocation2], 4
      %s24 = int_to_ptr.vmem [resolvable:$true] %s23
      %26 = dma.hbm_to_vmem [thread:$0]  %s22, 448, %s24, [#allocation3]
    $region5: #{tpu_custom_call.1} parent=1 // pred_fallthru
      _
    // Predicated region
    $region6: #{tpu_custom_call.1} parent=1 // pred_check
      _
    $region7: #{tpu_custom_call.1} parent=1 // pred_check_branch
      %28 = sbr.rel (0) target = $region9
    $region8: #{tpu_custom_call.1} parent=1 // pred_region
      %30 = vsyncadd [#allocation6], 0
      %s31 = sshll.u32 %s1, 4
      %s32 = int_to_ptr.hbm [resolvable:$true] %s31
      %s33 = sshll.u32 [#allocation5], 4
      %s34 = int_to_ptr.vmem [resolvable:$true] %s33
      %39 = dma.hbm_to_vmem [thread:$0]  %s32, 14336, %s34, [#allocation6], 128, 128, 8
    $region9: #{tpu_custom_call.1} parent=1 // pred_fallthru
      _
    // Predicated region
    $region10: #{tpu_custom_call.1} parent=1 // pred_check
      _
    $region11: #{tpu_custom_call.1} parent=1 // pred_check_branch
      %41 = sbr.rel (0) target = $region13
    $region12: #{tpu_custom_call.1} parent=1 // pred_region
      %43 = vsyncadd [#allocation6], 0
      %s45 = sshll.u32 %s2, 4
      %s46 = int_to_ptr.hbm [resolvable:$true] %s45
      %s47 = sshll.u32 [#allocation7], 4
      %s48 = int_to_ptr.vmem [resolvable:$true] %s47
      %50 = dma.hbm_to_vmem [thread:$0]  %s46, 32, %s48, [#allocation6]
    $region13: #{tpu_custom_call.1} parent=1 // pred_fallthru
      _
    // Predicated region
    $region14: #{tpu_custom_call.1} parent=1 // pred_check
      _
    $region15: #{tpu_custom_call.1} parent=1 // pred_check_branch
      %52 = sbr.rel (0) target = $region17
    $region16: #{tpu_custom_call.1} parent=1 // pred_region
      %54 = vsyncadd [#allocation9], 0
      %s55 = sshll.u32 %s3, 4
      %s56 = int_to_ptr.hbm [resolvable:$true] %s55
      %s57 = sshll.u32 [#allocation8], 4
      %s58 = int_to_ptr.vmem [resolvable:$true] %s57
      %63 = dma.hbm_to_vmem [thread:$0]  %s56, 4096, %s58, [#allocation9], 128, 128, 8
    $region17: #{tpu_custom_call.1} parent=1 // pred_fallthru
      _
    // Predicated region
    $region18: #{tpu_custom_call.1} parent=1 // pred_check
      _
    $region19: #{tpu_custom_call.1} parent=1 // pred_check_branch
      %65 = sbr.rel (0) target = $region21
    $region20: #{tpu_custom_call.1} parent=1 // pred_region
      _
    $region21: #{tpu_custom_call.1} parent=1 // pred_fallthru
      _
    // Predicated region
    $region22: #{tpu_custom_call.1} parent=1 // pred_check
      _
    $region23: #{tpu_custom_call.1} parent=1 // pred_check_branch
      %67 = sbr.rel (0) target = $region25
    $region24: #{tpu_custom_call.1} parent=1 // pred_region
      %69 = vsyncadd [#allocation9], 0
      %s70 = sshll.u32 %s5, 4
      %s71 = int_to_ptr.hbm [resolvable:$true] %s70
      %s72 = sshll.u32 [#allocation10], 4
      %s73 = int_to_ptr.vmem [resolvable:$true] %s72
      %78 = dma.hbm_to_vmem [thread:$0]  %s71, 2048, %s73, [#allocation9], 64, 64, 4
    $region25: #{tpu_custom_call.1} parent=1 // pred_fallthru
      _
    // Predicated region
    $region26: #{tpu_custom_call.1} parent=1 // pred_check
      _
    $region27: #{tpu_custom_call.1} parent=1 // pred_check_branch
      %80 = sbr.rel (0) target = $region29
    $region28: #{tpu_custom_call.1} parent=1 // pred_region
      _
    $region29: #{tpu_custom_call.1} parent=1 // pred_fallthru
      _
    // Predicated region
    $region30: #{tpu_custom_call.1} parent=1 // pred_check
      _
    $region31: #{tpu_custom_call.1} parent=1 // pred_check_branch
      %82 = sbr.rel (0) target = $region33
    $region32: #{tpu_custom_call.1} parent=1 // pred_region
      %84 = dma.done [#allocation3], 448
    $region33: #{tpu_custom_call.1} parent=1 // pred_fallthru
      _
    // Predicated region
    $region34: #{tpu_custom_call.1} parent=1 // pred_check
      _
    $region35: #{tpu_custom_call.1} parent=1 // pred_check_branch
      %86 = sbr.rel (0) target = $region37
    $region36: #{tpu_custom_call.1} parent=1 // pred_region
      %88 = dma.done [#allocation6], 14336
    $region37: #{tpu_custom_call.1} parent=1 // pred_fallthru
      _
    // Predicated region
    $region38: #{tpu_custom_call.1} parent=1 // pred_check
      _
    $region39: #{tpu_custom_call.1} parent=1 // pred_check_branch
      %90 = sbr.rel (0) target = $region41
    $region40: #{tpu_custom_call.1} parent=1 // pred_region
      %92 = dma.done [#allocation6], 32
    $region41: #{tpu_custom_call.1} parent=1 // pred_fallthru
      _
    // Predicated region
    $region42: #{tpu_custom_call.1} parent=1 // pred_check
      _
    $region43: #{tpu_custom_call.1} parent=1 // pred_check_branch
      %94 = sbr.rel (0) target = $region45
    $region44: #{tpu_custom_call.1} parent=1 // pred_region
      %96 = dma.done [#allocation9], 4096
    $region45: #{tpu_custom_call.1} parent=1 // pred_fallthru
      _
    // Predicated region
    $region46: #{tpu_custom_call.1} parent=1 // pred_check
      _
    $region47: #{tpu_custom_call.1} parent=1 // pred_check_branch
      %98 = sbr.rel (0) target = $region49
    $region48: #{tpu_custom_call.1} parent=1 // pred_region
      %100 = dma.done [#allocation9], 2048
    $region49: #{tpu_custom_call.1} parent=1 // pred_fallthru
      _
    %v101 = vld [vmem:[#allocation2] sm:$0xff]
    %v102 = vld [vmem:[#allocation2 + $0x8] sm:$0xff]
    %v103 = vld [vmem:[#allocation2 + $0x10] sm:$0xff]
    %v104 = vld [vmem:[#allocation2 + $0x18] sm:$0xf]
    %v105 = vld [vmem:[#allocation5] sm:$0xff]
    %v106 = vld [vmem:[#allocation5 + $0x8] sm:$0xff]
    %v107 = vld [vmem:[#allocation5 + $0x10] sm:$0xff]
    %v108 = vld [vmem:[#allocation5 + $0x18] sm:$0xff]
    %v109 = vld [vmem:[#allocation5 + $0x20] sm:$0xff]
    %v110 = vld [vmem:[#allocation5 + $0x28] sm:$0xff]
    %v111 = vld [vmem:[#allocation5 + $0x30] sm:$0xff]
    %v112 = vld [vmem:[#allocation5 + $0x38] sm:$0xff]
    %v113 = vld [vmem:[#allocation5 + $0x40] sm:$0xff]
    %v114 = vld [vmem:[#allocation5 + $0x48] sm:$0xff]
    %v115 = vld [vmem:[#allocation5 + $0x50] sm:$0xff]
    %v116 = vld [vmem:[#allocation5 + $0x58] sm:$0xff]
    %v117 = vld [vmem:[#allocation5 + $0x60] sm:$0xff]
    %v118 = vld [vmem:[#allocation5 + $0x68] sm:$0xff]
    %v119 = vld [vmem:[#allocation5 + $0x70] sm:$0xff]
    %v120 = vld [vmem:[#allocation5 + $0x78] sm:$0xff]
    %v121 = vld [vmem:[#allocation5 + $0x80] sm:$0xff]
    %v122 = vld [vmem:[#allocation5 + $0x88] sm:$0xff]
    %v123 = vld [vmem:[#allocation5 + $0x90] sm:$0xff]
    %v124 = vld [vmem:[#allocation5 + $0x98] sm:$0xff]
    %v125 = vld [vmem:[#allocation5 + $0xa0] sm:$0xff]
    %v126 = vld [vmem:[#allocation5 + $0xa8] sm:$0xff]
    %v127 = vld [vmem:[#allocation5 + $0xb0] sm:$0xff]
    %v128 = vld [vmem:[#allocation5 + $0xb8] sm:$0xff]
    %v129 = vld [vmem:[#allocation5 + $0xc0] sm:$0xff]
    %v130 = vld [vmem:[#allocation5 + $0xc8] sm:$0xff]
    %v131 = vld [vmem:[#allocation5 + $0xd0] sm:$0xff]
    %v132 = vld [vmem:[#allocation5 + $0xd8] sm:$0xff]
    %v133 = vld [vmem:[#allocation5 + $0xe0] sm:$0xff]
    %v134 = vld [vmem:[#allocation5 + $0xe8] sm:$0xff]
    %v135 = vld [vmem:[#allocation5 + $0xf0] sm:$0xff]
    %v136 = vld [vmem:[#allocation5 + $0xf8] sm:$0xff]
    %v137 = vld [vmem:[#allocation5 + $0x100] sm:$0xff]
    %v138 = vld [vmem:[#allocation5 + $0x108] sm:$0xff]
    %v139 = vld [vmem:[#allocation5 + $0x110] sm:$0xff]
    %v140 = vld [vmem:[#allocation5 + $0x118] sm:$0xff]
    %v141 = vld [vmem:[#allocation5 + $0x120] sm:$0xff]
    %v142 = vld [vmem:[#allocation5 + $0x128] sm:$0xff]
    %v143 = vld [vmem:[#allocation5 + $0x130] sm:$0xff]
    %v144 = vld [vmem:[#allocation5 + $0x138] sm:$0xff]
    %v145 = vld [vmem:[#allocation5 + $0x140] sm:$0xff]
    %v146 = vld [vmem:[#allocation5 + $0x148] sm:$0xff]
    %v147 = vld [vmem:[#allocation5 + $0x150] sm:$0xff]
    %v148 = vld [vmem:[#allocation5 + $0x158] sm:$0xff]
    %v149 = vld [vmem:[#allocation5 + $0x160] sm:$0xff]
    %v150 = vld [vmem:[#allocation5 + $0x168] sm:$0xff]
    %v151 = vld [vmem:[#allocation5 + $0x170] sm:$0xff]
    %v152 = vld [vmem:[#allocation5 + $0x178] sm:$0xff]
    %v153 = vld [vmem:[#allocation5 + $0x180] sm:$0xff]
    %v154 = vld [vmem:[#allocation5 + $0x188] sm:$0xff]
    %v155 = vld [vmem:[#allocation5 + $0x190] sm:$0xff]
    %v156 = vld [vmem:[#allocation5 + $0x198] sm:$0xff]
    %v157 = vld [vmem:[#allocation5 + $0x1a0] sm:$0xff]
    %v158 = vld [vmem:[#allocation5 + $0x1a8] sm:$0xff]
    %v159 = vld [vmem:[#allocation5 + $0x1b0] sm:$0xff]
    %v160 = vld [vmem:[#allocation5 + $0x1b8] sm:$0xff]
    %v161 = vld [vmem:[#allocation5 + $0x1c0] sm:$0xff]
    %v162 = vld [vmem:[#allocation5 + $0x1c8] sm:$0xff]
    %v163 = vld [vmem:[#allocation5 + $0x1d0] sm:$0xff]
    %v164 = vld [vmem:[#allocation5 + $0x1d8] sm:$0xff]
    %v165 = vld [vmem:[#allocation5 + $0x1e0] sm:$0xff]
    %v166 = vld [vmem:[#allocation5 + $0x1e8] sm:$0xff]
    %v167 = vld [vmem:[#allocation5 + $0x1f0] sm:$0xff]
    %v168 = vld [vmem:[#allocation5 + $0x1f8] sm:$0xff]
    %v169 = vld [vmem:[#allocation5 + $0x200] sm:$0xff]
    %v170 = vld [vmem:[#allocation5 + $0x208] sm:$0xff]
    %v171 = vld [vmem:[#allocation5 + $0x210] sm:$0xff]
    %v172 = vld [vmem:[#allocation5 + $0x218] sm:$0xff]
    %v173 = vld [vmem:[#allocation5 + $0x220] sm:$0xff]
    %v174 = vld [vmem:[#allocation5 + $0x228] sm:$0xff]
    %v175 = vld [vmem:[#allocation5 + $0x230] sm:$0xff]
    %v176 = vld [vmem:[#allocation5 + $0x238] sm:$0xff]
    %v177 = vld [vmem:[#allocation5 + $0x240] sm:$0xff]
    %v178 = vld [vmem:[#allocation5 + $0x248] sm:$0xff]
    %v179 = vld [vmem:[#allocation5 + $0x250] sm:$0xff]
    %v180 = vld [vmem:[#allocation5 + $0x258] sm:$0xff]
    %v181 = vld [vmem:[#allocation5 + $0x260] sm:$0xff]
    %v182 = vld [vmem:[#allocation5 + $0x268] sm:$0xff]
    %v183 = vld [vmem:[#allocation5 + $0x270] sm:$0xff]
    %v184 = vld [vmem:[#allocation5 + $0x278] sm:$0xff]
    %v185 = vld [vmem:[#allocation5 + $0x280] sm:$0xff]
    %v186 = vld [vmem:[#allocation5 + $0x288] sm:$0xff]
    %v187 = vld [vmem:[#allocation5 + $0x290] sm:$0xff]
    %v188 = vld [vmem:[#allocation5 + $0x298] sm:$0xff]
    %v189 = vld [vmem:[#allocation5 + $0x2a0] sm:$0xff]
    %v190 = vld [vmem:[#allocation5 + $0x2a8] sm:$0xff]
    %v191 = vld [vmem:[#allocation5 + $0x2b0] sm:$0xff]
    %v192 = vld [vmem:[#allocation5 + $0x2b8] sm:$0xff]
    %v193 = vld [vmem:[#allocation5 + $0x2c0] sm:$0xff]
    %v194 = vld [vmem:[#allocation5 + $0x2c8] sm:$0xff]
    %v195 = vld [vmem:[#allocation5 + $0x2d0] sm:$0xff]
    %v196 = vld [vmem:[#allocation5 + $0x2d8] sm:$0xff]
    %v197 = vld [vmem:[#allocation5 + $0x2e0] sm:$0xff]
    %v198 = vld [vmem:[#allocation5 + $0x2e8] sm:$0xff]
    %v199 = vld [vmem:[#allocation5 + $0x2f0] sm:$0xff]
    %v200 = vld [vmem:[#allocation5 + $0x2f8] sm:$0xff]
    %v201 = vld [vmem:[#allocation5 + $0x300] sm:$0xff]
    %v202 = vld [vmem:[#allocation5 + $0x308] sm:$0xff]
    %v203 = vld [vmem:[#allocation5 + $0x310] sm:$0xff]
    %v204 = vld [vmem:[#allocation5 + $0x318] sm:$0xff]
    %v205 = vld [vmem:[#allocation5 + $0x320] sm:$0xff]
    %v206 = vld [vmem:[#allocation5 + $0x328] sm:$0xff]
    %v207 = vld [vmem:[#allocation5 + $0x330] sm:$0xff]
    %v208 = vld [vmem:[#allocation5 + $0x338] sm:$0xff]
    %v209 = vld [vmem:[#allocation5 + $0x340] sm:$0xff]
    %v210 = vld [vmem:[#allocation5 + $0x348] sm:$0xff]
    %v211 = vld [vmem:[#allocation5 + $0x350] sm:$0xff]
    %v212 = vld [vmem:[#allocation5 + $0x358] sm:$0xff]
    %v213 = vld [vmem:[#allocation5 + $0x360] sm:$0xff]
    %v214 = vld [vmem:[#allocation5 + $0x368] sm:$0xff]
    %v215 = vld [vmem:[#allocation5 + $0x370] sm:$0xff]
    %v216 = vld [vmem:[#allocation5 + $0x378] sm:$0xff]
    %v217 = vld [vmem:[#allocation7] sm:$0x3]
    %v219 = vperm.slane %v217, 0
    %v220 = vperm.slane %v217, 1
    %v227 = vunpack.c.l.b16 %v101
    %v228 = vunpack.c.h.b16 %v101
    %v229 = vunpack.c.l.b16 %v102
    %v230 = vunpack.c.h.b16 %v102
    %v231 = vunpack.c.l.b16 %v103
    %v232 = vunpack.c.h.b16 %v103
    %v233 = vunpack.c.l.b16 %v104
    %v234 = vpack.c.b16 %v227, %v227
    %v235 = vpack.c.b16 %v228, %v228
    %v236 = vpack.c.b16 %v229, %v229
    %v237 = vpack.c.b16 %v230, %v230
    %v238 = vpack.c.b16 %v231, %v231
    %v239 = vpack.c.b16 %v232, %v232
    %v240 = vpack.c.b16 %v233, %v233
    %v360 = vunpack.c.l.b16 %v105
    %v361 = vunpack.c.h.b16 %v105
    %v362 = vunpack.c.l.b16 %v106
    %v363 = vunpack.c.h.b16 %v106
    %v364 = vunpack.c.l.b16 %v107
    %v365 = vunpack.c.h.b16 %v107
    %v366 = vunpack.c.l.b16 %v108
    %v367 = vunpack.c.h.b16 %v108
    %v368 = vunpack.c.l.b16 %v109
    %v369 = vunpack.c.h.b16 %v109
    %v370 = vunpack.c.l.b16 %v110
    %v371 = vunpack.c.h.b16 %v110
    %v372 = vunpack.c.l.b16 %v111
    %v373 = vunpack.c.h.b16 %v111
    %v374 = vunpack.c.l.b16 %v112
    %v375 = vunpack.c.h.b16 %v112
    %v376 = vunpack.c.l.b16 %v113
    %v377 = vunpack.c.h.b16 %v113
    %v378 = vunpack.c.l.b16 %v114
    %v379 = vunpack.c.h.b16 %v114
    %v380 = vunpack.c.l.b16 %v115
    %v381 = vunpack.c.h.b16 %v115
    %v382 = vunpack.c.l.b16 %v116
    %v383 = vunpack.c.h.b16 %v116
    %v384 = vunpack.c.l.b16 %v117
    %v385 = vunpack.c.h.b16 %v117
    %v386 = vunpack.c.l.b16 %v118
    %v387 = vunpack.c.h.b16 %v118
    %v388 = vunpack.c.l.b16 %v119
    %v389 = vunpack.c.h.b16 %v119
    %v390 = vunpack.c.l.b16 %v120
    %v391 = vunpack.c.h.b16 %v120
    %v392 = vunpack.c.l.b16 %v121
    %v393 = vunpack.c.h.b16 %v121
    %v394 = vunpack.c.l.b16 %v122
    %v395 = vunpack.c.h.b16 %v122
    %v396 = vunpack.c.l.b16 %v123
    %v397 = vunpack.c.h.b16 %v123
    %v398 = vunpack.c.l.b16 %v124
    %v399 = vunpack.c.h.b16 %v124
    %v400 = vunpack.c.l.b16 %v125
    %v401 = vunpack.c.h.b16 %v125
    %v402 = vunpack.c.l.b16 %v126
    %v403 = vunpack.c.h.b16 %v126
    %v404 = vunpack.c.l.b16 %v127
    %v405 = vunpack.c.h.b16 %v127
    %v406 = vunpack.c.l.b16 %v128
    %v407 = vunpack.c.h.b16 %v128
    %v408 = vunpack.c.l.b16 %v129
    %v409 = vunpack.c.h.b16 %v129
    %v410 = vunpack.c.l.b16 %v130
    %v411 = vunpack.c.h.b16 %v130
    %v412 = vunpack.c.l.b16 %v131
    %v413 = vunpack.c.h.b16 %v131
    %v414 = vunpack.c.l.b16 %v132
    %v415 = vunpack.c.h.b16 %v132
    %v416 = vunpack.c.l.b16 %v133
    %v417 = vunpack.c.h.b16 %v133
    %v418 = vunpack.c.l.b16 %v134
    %v419 = vunpack.c.h.b16 %v134
    %v420 = vunpack.c.l.b16 %v135
    %v421 = vunpack.c.h.b16 %v135
    %v422 = vunpack.c.l.b16 %v136
    %v423 = vunpack.c.h.b16 %v136
    %v424 = vunpack.c.l.b16 %v137
    %v425 = vunpack.c.h.b16 %v137
    %v426 = vunpack.c.l.b16 %v138
    %v427 = vunpack.c.h.b16 %v138
    %v428 = vunpack.c.l.b16 %v139
    %v429 = vunpack.c.h.b16 %v139
    %v430 = vunpack.c.l.b16 %v140
    %v431 = vunpack.c.h.b16 %v140
    %v432 = vunpack.c.l.b16 %v141
    %v433 = vunpack.c.h.b16 %v141
    %v434 = vunpack.c.l.b16 %v142
    %v435 = vunpack.c.h.b16 %v142
    %v436 = vunpack.c.l.b16 %v143
    %v437 = vunpack.c.h.b16 %v143
    %v438 = vunpack.c.l.b16 %v144
    %v439 = vunpack.c.h.b16 %v144
    %v440 = vunpack.c.l.b16 %v145
    %v441 = vunpack.c.h.b16 %v145
    %v442 = vunpack.c.l.b16 %v146
    %v443 = vunpack.c.h.b16 %v146
    %v444 = vunpack.c.l.b16 %v147
    %v445 = vunpack.c.h.b16 %v147
    %v446 = vunpack.c.l.b16 %v148
    %v447 = vunpack.c.h.b16 %v148
    %v448 = vunpack.c.l.b16 %v149
    %v449 = vunpack.c.h.b16 %v149
    %v450 = vunpack.c.l.b16 %v150
    %v451 = vunpack.c.h.b16 %v150
    %v452 = vunpack.c.l.b16 %v151
    %v453 = vunpack.c.h.b16 %v151
    %v454 = vunpack.c.l.b16 %v152
    %v455 = vunpack.c.h.b16 %v152
    %v456 = vunpack.c.l.b16 %v153
    %v457 = vunpack.c.h.b16 %v153
    %v458 = vunpack.c.l.b16 %v154
    %v459 = vunpack.c.h.b16 %v154
    %v460 = vunpack.c.l.b16 %v155
    %v461 = vunpack.c.h.b16 %v155
    %v462 = vunpack.c.l.b16 %v156
    %v463 = vunpack.c.h.b16 %v156
    %v464 = vunpack.c.l.b16 %v157
    %v465 = vunpack.c.h.b16 %v157
    %v466 = vunpack.c.l.b16 %v158
    %v467 = vunpack.c.h.b16 %v158
    %v468 = vunpack.c.l.b16 %v159
    %v469 = vunpack.c.h.b16 %v159
    %v470 = vunpack.c.l.b16 %v160
    %v471 = vunpack.c.h.b16 %v160
    %v472 = vunpack.c.l.b16 %v161
    %v473 = vunpack.c.h.b16 %v161
    %v474 = vunpack.c.l.b16 %v162
    %v475 = vunpack.c.h.b16 %v162
    %v476 = vunpack.c.l.b16 %v163
    %v477 = vunpack.c.h.b16 %v163
    %v478 = vunpack.c.l.b16 %v164
    %v479 = vunpack.c.h.b16 %v164
    %v480 = vunpack.c.l.b16 %v165
    %v481 = vunpack.c.h.b16 %v165
    %v482 = vunpack.c.l.b16 %v166
    %v483 = vunpack.c.h.b16 %v166
    %v484 = vunpack.c.l.b16 %v167
    %v485 = vunpack.c.h.b16 %v167
    %v486 = vunpack.c.l.b16 %v168
    %v487 = vunpack.c.h.b16 %v168
    %v488 = vunpack.c.l.b16 %v169
    %v489 = vunpack.c.h.b16 %v169
    %v490 = vunpack.c.l.b16 %v170
    %v491 = vunpack.c.h.b16 %v170
    %v492 = vunpack.c.l.b16 %v171
    %v493 = vunpack.c.h.b16 %v171
    %v494 = vunpack.c.l.b16 %v172
    %v495 = vunpack.c.h.b16 %v172
    %v496 = vunpack.c.l.b16 %v173
    %v497 = vunpack.c.h.b16 %v173
    %v498 = vunpack.c.l.b16 %v174
    %v499 = vunpack.c.h.b16 %v174
    %v500 = vunpack.c.l.b16 %v175
    %v501 = vunpack.c.h.b16 %v175
    %v502 = vunpack.c.l.b16 %v176
    %v503 = vunpack.c.h.b16 %v176
    %v504 = vunpack.c.l.b16 %v177
    %v505 = vunpack.c.h.b16 %v177
    %v506 = vunpack.c.l.b16 %v178
    %v507 = vunpack.c.h.b16 %v178
    %v508 = vunpack.c.l.b16 %v179
    %v509 = vunpack.c.h.b16 %v179
    %v510 = vunpack.c.l.b16 %v180
    %v511 = vunpack.c.h.b16 %v180
    %v512 = vunpack.c.l.b16 %v181
    %v513 = vunpack.c.h.b16 %v181
    %v514 = vunpack.c.l.b16 %v182
    %v515 = vunpack.c.h.b16 %v182
    %v516 = vunpack.c.l.b16 %v183
    %v517 = vunpack.c.h.b16 %v183
    %v518 = vunpack.c.l.b16 %v184
    %v519 = vunpack.c.h.b16 %v184
    %v520 = vunpack.c.l.b16 %v185
    %v521 = vunpack.c.h.b16 %v185
    %v522 = vunpack.c.l.b16 %v186
    %v523 = vunpack.c.h.b16 %v186
    %v524 = vunpack.c.l.b16 %v187
    %v525 = vunpack.c.h.b16 %v187
    %v526 = vunpack.c.l.b16 %v188
    %v527 = vunpack.c.h.b16 %v188
    %v528 = vunpack.c.l.b16 %v189
    %v529 = vunpack.c.h.b16 %v189
    %v530 = vunpack.c.l.b16 %v190
    %v531 = vunpack.c.h.b16 %v190
    %v532 = vunpack.c.l.b16 %v191
    %v533 = vunpack.c.h.b16 %v191
    %v534 = vunpack.c.l.b16 %v192
    %v535 = vunpack.c.h.b16 %v192
    %v536 = vunpack.c.l.b16 %v193
    %v537 = vunpack.c.h.b16 %v193
    %v538 = vunpack.c.l.b16 %v194
    %v539 = vunpack.c.h.b16 %v194
    %v540 = vunpack.c.l.b16 %v195
    %v541 = vunpack.c.h.b16 %v195
    %v542 = vunpack.c.l.b16 %v196
    %v543 = vunpack.c.h.b16 %v196
    %v544 = vunpack.c.l.b16 %v197
    %v545 = vunpack.c.h.b16 %v197
    %v546 = vunpack.c.l.b16 %v198
    %v547 = vunpack.c.h.b16 %v198
    %v548 = vunpack.c.l.b16 %v199
    %v549 = vunpack.c.h.b16 %v199
    %v550 = vunpack.c.l.b16 %v200
    %v551 = vunpack.c.h.b16 %v200
    %v552 = vunpack.c.l.b16 %v201
    %v553 = vunpack.c.h.b16 %v201
    %v554 = vunpack.c.l.b16 %v202
    %v555 = vunpack.c.h.b16 %v202
    %v556 = vunpack.c.l.b16 %v203
    %v557 = vunpack.c.h.b16 %v203
    %v558 = vunpack.c.l.b16 %v204
    %v559 = vunpack.c.h.b16 %v204
    %v560 = vunpack.c.l.b16 %v205
    %v561 = vunpack.c.h.b16 %v205
    %v562 = vunpack.c.l.b16 %v206
    %v563 = vunpack.c.h.b16 %v206
    %v564 = vunpack.c.l.b16 %v207
    %v565 = vunpack.c.h.b16 %v207
    %v566 = vunpack.c.l.b16 %v208
    %v567 = vunpack.c.h.b16 %v208
    %v568 = vunpack.c.l.b16 %v209
    %v569 = vunpack.c.h.b16 %v209
    %v570 = vunpack.c.l.b16 %v210
    %v571 = vunpack.c.h.b16 %v210
    %v572 = vunpack.c.l.b16 %v211
    %v573 = vunpack.c.h.b16 %v211
    %v574 = vunpack.c.l.b16 %v212
    %v575 = vunpack.c.h.b16 %v212
    %v576 = vunpack.c.l.b16 %v213
    %v577 = vunpack.c.h.b16 %v213
    %v578 = vunpack.c.l.b16 %v214
    %v579 = vunpack.c.h.b16 %v214
    %v580 = vunpack.c.l.b16 %v215
    %v581 = vunpack.c.h.b16 %v215
    %v582 = vunpack.c.l.b16 %v216
    %v583 = vunpack.c.h.b16 %v216
    %v584 = vpack.c.b16 %v362, %v360
    %v585 = vpack.c.b16 %v363, %v361
    %v586 = vpack.c.b16 %v366, %v364
    %v587 = vpack.c.b16 %v367, %v365
    %v588 = vpack.c.b16 %v370, %v368
    %v589 = vpack.c.b16 %v371, %v369
    %v590 = vpack.c.b16 %v374, %v372
    %v591 = vpack.c.b16 %v375, %v373
    %v592 = vpack.c.b16 %v378, %v376
    %v593 = vpack.c.b16 %v379, %v377
    %v594 = vpack.c.b16 %v382, %v380
    %v595 = vpack.c.b16 %v383, %v381
    %v596 = vpack.c.b16 %v386, %v384
    %v597 = vpack.c.b16 %v387, %v385
    %v598 = vpack.c.b16 %v390, %v388
    %v599 = vpack.c.b16 %v391, %v389
    %v600 = vpack.c.b16 %v394, %v392
    %v601 = vpack.c.b16 %v395, %v393
    %v602 = vpack.c.b16 %v398, %v396
    %v603 = vpack.c.b16 %v399, %v397
    %v604 = vpack.c.b16 %v402, %v400
    %v605 = vpack.c.b16 %v403, %v401
    %v606 = vpack.c.b16 %v406, %v404
    %v607 = vpack.c.b16 %v407, %v405
    %v608 = vpack.c.b16 %v410, %v408
    %v609 = vpack.c.b16 %v411, %v409
    %v610 = vpack.c.b16 %v414, %v412
    %v611 = vpack.c.b16 %v415, %v413
    %v612 = vpack.c.b16 %v418, %v416
    %v613 = vpack.c.b16 %v419, %v417
    %v614 = vpack.c.b16 %v422, %v420
    %v615 = vpack.c.b16 %v423, %v421
    %v616 = vpack.c.b16 %v426, %v424
    %v617 = vpack.c.b16 %v427, %v425
    %v618 = vpack.c.b16 %v430, %v428
    %v619 = vpack.c.b16 %v431, %v429
    %v620 = vpack.c.b16 %v434, %v432
    %v621 = vpack.c.b16 %v435, %v433
    %v622 = vpack.c.b16 %v438, %v436
    %v623 = vpack.c.b16 %v439, %v437
    %v624 = vpack.c.b16 %v442, %v440
    %v625 = vpack.c.b16 %v443, %v441
    %v626 = vpack.c.b16 %v446, %v444
    %v627 = vpack.c.b16 %v447, %v445
    %v628 = vpack.c.b16 %v450, %v448
    %v629 = vpack.c.b16 %v451, %v449
    %v630 = vpack.c.b16 %v454, %v452
    %v631 = vpack.c.b16 %v455, %v453
    %v632 = vpack.c.b16 %v458, %v456
    %v633 = vpack.c.b16 %v459, %v457
    %v634 = vpack.c.b16 %v462, %v460
    %v635 = vpack.c.b16 %v463, %v461
    %v636 = vpack.c.b16 %v466, %v464
    %v637 = vpack.c.b16 %v467, %v465
    %v638 = vpack.c.b16 %v470, %v468
    %v639 = vpack.c.b16 %v471, %v469
    %v640 = vpack.c.b16 %v474, %v472
    %v641 = vpack.c.b16 %v475, %v473
    %v642 = vpack.c.b16 %v478, %v476
    %v643 = vpack.c.b16 %v479, %v477
    %v644 = vpack.c.b16 %v482, %v480
    %v645 = vpack.c.b16 %v483, %v481
    %v646 = vpack.c.b16 %v486, %v484
    %v647 = vpack.c.b16 %v487, %v485
    %v648 = vpack.c.b16 %v490, %v488
    %v649 = vpack.c.b16 %v491, %v489
    %v650 = vpack.c.b16 %v494, %v492
    %v651 = vpack.c.b16 %v495, %v493
    %v652 = vpack.c.b16 %v498, %v496
    %v653 = vpack.c.b16 %v499, %v497
    %v654 = vpack.c.b16 %v502, %v500
    %v655 = vpack.c.b16 %v503, %v501
    %v656 = vpack.c.b16 %v506, %v504
    %v657 = vpack.c.b16 %v507, %v505
    %v658 = vpack.c.b16 %v510, %v508
    %v659 = vpack.c.b16 %v511, %v509
    %v660 = vpack.c.b16 %v514, %v512
    %v661 = vpack.c.b16 %v515, %v513
    %v662 = vpack.c.b16 %v518, %v516
    %v663 = vpack.c.b16 %v519, %v517
    %v664 = vpack.c.b16 %v522, %v520
    %v665 = vpack.c.b16 %v523, %v521
    %v666 = vpack.c.b16 %v526, %v524
    %v667 = vpack.c.b16 %v527, %v525
    %v668 = vpack.c.b16 %v530, %v528
    %v669 = vpack.c.b16 %v531, %v529
    %v670 = vpack.c.b16 %v534, %v532
    %v671 = vpack.c.b16 %v535, %v533
    %v672 = vpack.c.b16 %v538, %v536
    %v673 = vpack.c.b16 %v539, %v537
    %v674 = vpack.c.b16 %v542, %v540
    %v675 = vpack.c.b16 %v543, %v541
    %v676 = vpack.c.b16 %v546, %v544
    %v677 = vpack.c.b16 %v547, %v545
    %v678 = vpack.c.b16 %v550, %v548
    %v679 = vpack.c.b16 %v551, %v549
    %v680 = vpack.c.b16 %v554, %v552
    %v681 = vpack.c.b16 %v555, %v553
    %v682 = vpack.c.b16 %v558, %v556
    %v683 = vpack.c.b16 %v559, %v557
    %v684 = vpack.c.b16 %v562, %v560
    %v685 = vpack.c.b16 %v563, %v561
    %v686 = vpack.c.b16 %v566, %v564
    %v687 = vpack.c.b16 %v567, %v565
    %v688 = vpack.c.b16 %v570, %v568
    %v689 = vpack.c.b16 %v571, %v569
    %v690 = vpack.c.b16 %v574, %v572
    %v691 = vpack.c.b16 %v575, %v573
    %v692 = vpack.c.b16 %v578, %v576
    %v693 = vpack.c.b16 %v579, %v577
    %v694 = vpack.c.b16 %v582, %v580
    %v695 = vpack.c.b16 %v583, %v581
    %808 = vmatpush.bf16.msra.mxu0 %v598
    %809 = vmatpush.bf16.msra.mxu0 %v596
    %810 = vmatpush.bf16.msra.mxu0 %v594
    %811 = vmatpush.bf16.msra.mxu0 %v592
    %812 = vmatpush.bf16.msra.mxu0 %v590
    %813 = vmatpush.bf16.msra.mxu0 %v588
    %814 = vmatpush.bf16.msra.mxu0 %v586
    %815 = vmatpush.bf16.msra.mxu0 %v584
    %816 = vmatmul.bf16.gmra.mxu0 %v234
    %v817 = vpop.f32.mrf.mxu0
    %v818 = vadd.f32 %v219, %v817
    %v819 = vpop.f32.mrf.mxu0
    %820 = vdwg.mxu0
    %821 = vmatpush.bf16.msra.mxu0 %v614
    %822 = vmatpush.bf16.msra.mxu0 %v612
    %823 = vmatpush.bf16.msra.mxu0 %v610
    %824 = vmatpush.bf16.msra.mxu0 %v608
    %825 = vmatpush.bf16.msra.mxu0 %v606
    %826 = vmatpush.bf16.msra.mxu0 %v604
    %827 = vmatpush.bf16.msra.mxu0 %v602
    %828 = vmatpush.bf16.msra.mxu0 %v600
    %829 = vmatmul.bf16.gmra.mxu0 %v235
    %v830 = vpop.f32.mrf.mxu0
    %v831 = vadd.f32 %v818, %v830
    %v832 = vpop.f32.mrf.mxu0
    %833 = vdwg.mxu0
    %834 = vmatpush.bf16.msra.mxu0 %v630
    %835 = vmatpush.bf16.msra.mxu0 %v628
    %836 = vmatpush.bf16.msra.mxu0 %v626
    %837 = vmatpush.bf16.msra.mxu0 %v624
    %838 = vmatpush.bf16.msra.mxu0 %v622
    %839 = vmatpush.bf16.msra.mxu0 %v620
    %840 = vmatpush.bf16.msra.mxu0 %v618
    %841 = vmatpush.bf16.msra.mxu0 %v616
    %842 = vmatmul.bf16.gmra.mxu0 %v236
    %v843 = vpop.f32.mrf.mxu0
    %v844 = vadd.f32 %v831, %v843
    %v845 = vpop.f32.mrf.mxu0
    %846 = vdwg.mxu0
    %847 = vmatpush.bf16.msra.mxu0 %v646
    %848 = vmatpush.bf16.msra.mxu0 %v644
    %849 = vmatpush.bf16.msra.mxu0 %v642
    %850 = vmatpush.bf16.msra.mxu0 %v640
    %851 = vmatpush.bf16.msra.mxu0 %v638
    %852 = vmatpush.bf16.msra.mxu0 %v636
    %853 = vmatpush.bf16.msra.mxu0 %v634
    %854 = vmatpush.bf16.msra.mxu0 %v632
    %855 = vmatmul.bf16.gmra.mxu0 %v237
    %v856 = vpop.f32.mrf.mxu0
    %v857 = vadd.f32 %v844, %v856
    %v858 = vpop.f32.mrf.mxu0
    %859 = vdwg.mxu0
    %860 = vmatpush.bf16.msra.mxu0 %v662
    %861 = vmatpush.bf16.msra.mxu0 %v660
    %862 = vmatpush.bf16.msra.mxu0 %v658
    %863 = vmatpush.bf16.msra.mxu0 %v656
    %864 = vmatpush.bf16.msra.mxu0 %v654
    %865 = vmatpush.bf16.msra.mxu0 %v652
    %866 = vmatpush.bf16.msra.mxu0 %v650
    %867 = vmatpush.bf16.msra.mxu0 %v648
    %868 = vmatmul.bf16.gmra.mxu0 %v238
    %v869 = vpop.f32.mrf.mxu0
    %v870 = vadd.f32 %v857, %v869
    %v871 = vpop.f32.mrf.mxu0
    %872 = vdwg.mxu0
    %873 = vmatpush.bf16.msra.mxu0 %v678
    %874 = vmatpush.bf16.msra.mxu0 %v676
    %875 = vmatpush.bf16.msra.mxu0 %v674
    %876 = vmatpush.bf16.msra.mxu0 %v672
    %877 = vmatpush.bf16.msra.mxu0 %v670
    %878 = vmatpush.bf16.msra.mxu0 %v668
    %879 = vmatpush.bf16.msra.mxu0 %v666
    %880 = vmatpush.bf16.msra.mxu0 %v664
    %881 = vmatmul.bf16.gmra.mxu0 %v239
    %v882 = vpop.f32.mrf.mxu0
    %v883 = vadd.f32 %v870, %v882
    %v884 = vpop.f32.mrf.mxu0
    %885 = vdwg.mxu0
    %886 = vmatpush.bf16.msra.mxu0 %v694
    %887 = vmatpush.bf16.msra.mxu0 %v692
    %888 = vmatpush.bf16.msra.mxu0 %v690
    %889 = vmatpush.bf16.msra.mxu0 %v688
    %890 = vmatpush.bf16.msra.mxu0 %v686
    %891 = vmatpush.bf16.msra.mxu0 %v684
    %892 = vmatpush.bf16.msra.mxu0 %v682
    %893 = vmatpush.bf16.msra.mxu0 %v680
    %894 = vmatmul.bf16.gmra.mxu0 %v240
    %v895 = vpop.f32.mrf.mxu0
    %v896 = vadd.f32 %v883, %v895
    %v897 = vpop.f32.mrf.mxu0
    %898 = vdwg.mxu0
    %899 = vmatpush.bf16.msra.mxu0 %v599
    %900 = vmatpush.bf16.msra.mxu0 %v597
    %901 = vmatpush.bf16.msra.mxu0 %v595
    %902 = vmatpush.bf16.msra.mxu0 %v593
    %903 = vmatpush.bf16.msra.mxu0 %v591
    %904 = vmatpush.bf16.msra.mxu0 %v589
    %905 = vmatpush.bf16.msra.mxu0 %v587
    %906 = vmatpush.bf16.msra.mxu0 %v585
    %907 = vmatmul.bf16.gmra.mxu0 %v234
    %v908 = vpop.f32.mrf.mxu0
    %v909 = vadd.f32 %v220, %v908
    %v910 = vpop.f32.mrf.mxu0
    %911 = vdwg.mxu0
    %912 = vmatpush.bf16.msra.mxu0 %v615
    %913 = vmatpush.bf16.msra.mxu0 %v613
    %914 = vmatpush.bf16.msra.mxu0 %v611
    %915 = vmatpush.bf16.msra.mxu0 %v609
    %916 = vmatpush.bf16.msra.mxu0 %v607
    %917 = vmatpush.bf16.msra.mxu0 %v605
    %918 = vmatpush.bf16.msra.mxu0 %v603
    %919 = vmatpush.bf16.msra.mxu0 %v601
    %920 = vmatmul.bf16.gmra.mxu0 %v235
    %v921 = vpop.f32.mrf.mxu0
    %v922 = vadd.f32 %v909, %v921
    %v923 = vpop.f32.mrf.mxu0
    %924 = vdwg.mxu0
    %925 = vmatpush.bf16.msra.mxu0 %v631
    %926 = vmatpush.bf16.msra.mxu0 %v629
    %927 = vmatpush.bf16.msra.mxu0 %v627
    %928 = vmatpush.bf16.msra.mxu0 %v625
    %929 = vmatpush.bf16.msra.mxu0 %v623
    %930 = vmatpush.bf16.msra.mxu0 %v621
    %931 = vmatpush.bf16.msra.mxu0 %v619
    %932 = vmatpush.bf16.msra.mxu0 %v617
    %933 = vmatmul.bf16.gmra.mxu0 %v236
    %v934 = vpop.f32.mrf.mxu0
    %v935 = vadd.f32 %v922, %v934
    %v936 = vpop.f32.mrf.mxu0
    %937 = vdwg.mxu0
    %938 = vmatpush.bf16.msra.mxu0 %v647
    %939 = vmatpush.bf16.msra.mxu0 %v645
    %940 = vmatpush.bf16.msra.mxu0 %v643
    %941 = vmatpush.bf16.msra.mxu0 %v641
    %942 = vmatpush.bf16.msra.mxu0 %v639
    %943 = vmatpush.bf16.msra.mxu0 %v637
    %944 = vmatpush.bf16.msra.mxu0 %v635
    %945 = vmatpush.bf16.msra.mxu0 %v633
    %946 = vmatmul.bf16.gmra.mxu0 %v237
    %v947 = vpop.f32.mrf.mxu0
    %v948 = vadd.f32 %v935, %v947
    %v949 = vpop.f32.mrf.mxu0
    %950 = vdwg.mxu0
    %951 = vmatpush.bf16.msra.mxu0 %v663
    %952 = vmatpush.bf16.msra.mxu0 %v661
    %953 = vmatpush.bf16.msra.mxu0 %v659
    %954 = vmatpush.bf16.msra.mxu0 %v657
    %955 = vmatpush.bf16.msra.mxu0 %v655
    %956 = vmatpush.bf16.msra.mxu0 %v653
    %957 = vmatpush.bf16.msra.mxu0 %v651
    %958 = vmatpush.bf16.msra.mxu0 %v649
    %959 = vmatmul.bf16.gmra.mxu0 %v238
    %v960 = vpop.f32.mrf.mxu0
    %v961 = vadd.f32 %v948, %v960
    %v962 = vpop.f32.mrf.mxu0
    %963 = vdwg.mxu0
    %964 = vmatpush.bf16.msra.mxu0 %v679
    %965 = vmatpush.bf16.msra.mxu0 %v677
    %966 = vmatpush.bf16.msra.mxu0 %v675
    %967 = vmatpush.bf16.msra.mxu0 %v673
    %968 = vmatpush.bf16.msra.mxu0 %v671
    %969 = vmatpush.bf16.msra.mxu0 %v669
    %970 = vmatpush.bf16.msra.mxu0 %v667
    %971 = vmatpush.bf16.msra.mxu0 %v665
    %972 = vmatmul.bf16.gmra.mxu0 %v239
    %v973 = vpop.f32.mrf.mxu0
    %v974 = vadd.f32 %v961, %v973
    %v975 = vpop.f32.mrf.mxu0
    %976 = vdwg.mxu0
    %977 = vmatpush.bf16.msra.mxu0 %v695
    %978 = vmatpush.bf16.msra.mxu0 %v693
    %979 = vmatpush.bf16.msra.mxu0 %v691
    %980 = vmatpush.bf16.msra.mxu0 %v689
    %981 = vmatpush.bf16.msra.mxu0 %v687
    %982 = vmatpush.bf16.msra.mxu0 %v685
    %983 = vmatpush.bf16.msra.mxu0 %v683
    %984 = vmatpush.bf16.msra.mxu0 %v681
    %985 = vmatmul.bf16.gmra.mxu0 %v240
    %v986 = vpop.f32.mrf.mxu0
    %v987 = vadd.f32 %v974, %v986
    %v988 = vpop.f32.mrf.mxu0
    %989 = vdwg.mxu0
    %v990 = vmax.f32 %v896, 0.0
    %v991 = vmax.f32 %v987, 0.0
    %v992 = vpack.c.bf16 %v990, %v990
    %v993 = vpack.c.bf16 %v991, %v991
    %v994 = vld [vmem:[#allocation8] sm:$0xff]
    %v995 = vld [vmem:[#allocation8 + $0x8] sm:$0xff]
    %v996 = vld [vmem:[#allocation8 + $0x10] sm:$0xff]
    %v997 = vld [vmem:[#allocation8 + $0x18] sm:$0xff]
    %v998 = vld [vmem:[#allocation8 + $0x20] sm:$0xff]
    %v999 = vld [vmem:[#allocation8 + $0x28] sm:$0xff]
    %v1000 = vld [vmem:[#allocation8 + $0x30] sm:$0xff]
    %v1001 = vld [vmem:[#allocation8 + $0x38] sm:$0xff]
    %v1002 = vld [vmem:[#allocation8 + $0x40] sm:$0xff]
    %v1003 = vld [vmem:[#allocation8 + $0x48] sm:$0xff]
    %v1004 = vld [vmem:[#allocation8 + $0x50] sm:$0xff]
    %v1005 = vld [vmem:[#allocation8 + $0x58] sm:$0xff]
    %v1006 = vld [vmem:[#allocation8 + $0x60] sm:$0xff]
    %v1007 = vld [vmem:[#allocation8 + $0x68] sm:$0xff]
    %v1008 = vld [vmem:[#allocation8 + $0x70] sm:$0xff]
    %v1009 = vld [vmem:[#allocation8 + $0x78] sm:$0xff]
    %v1010 = vld [vmem:[#allocation8 + $0x80] sm:$0xff]
    %v1011 = vld [vmem:[#allocation8 + $0x88] sm:$0xff]
    %v1012 = vld [vmem:[#allocation8 + $0x90] sm:$0xff]
    %v1013 = vld [vmem:[#allocation8 + $0x98] sm:$0xff]
    %v1014 = vld [vmem:[#allocation8 + $0xa0] sm:$0xff]
    %v1015 = vld [vmem:[#allocation8 + $0xa8] sm:$0xff]
    %v1016 = vld [vmem:[#allocation8 + $0xb0] sm:$0xff]
    %v1017 = vld [vmem:[#allocation8 + $0xb8] sm:$0xff]
    %v1018 = vld [vmem:[#allocation8 + $0xc0] sm:$0xff]
    %v1019 = vld [vmem:[#allocation8 + $0xc8] sm:$0xff]
    %v1020 = vld [vmem:[#allocation8 + $0xd0] sm:$0xff]
    %v1021 = vld [vmem:[#allocation8 + $0xd8] sm:$0xff]
    %v1022 = vld [vmem:[#allocation8 + $0xe0] sm:$0xff]
    %v1023 = vld [vmem:[#allocation8 + $0xe8] sm:$0xff]
    %v1024 = vld [vmem:[#allocation8 + $0xf0] sm:$0xff]
    %v1025 = vld [vmem:[#allocation8 + $0xf8] sm:$0xff]
    %v1026 = vld [vmem:[%s4] sm:$0x3]
    %v1028 = vperm.slane %v1026, 0
    %v1029 = vperm.slane %v1026, 1
    %v1064 = vunpack.c.l.b16 %v994
    %v1065 = vunpack.c.h.b16 %v994
    %v1066 = vunpack.c.l.b16 %v995
    %v1067 = vunpack.c.h.b16 %v995
    %v1068 = vunpack.c.l.b16 %v996
    %v1069 = vunpack.c.h.b16 %v996
    %v1070 = vunpack.c.l.b16 %v997
    %v1071 = vunpack.c.h.b16 %v997
    %v1072 = vunpack.c.l.b16 %v998
    %v1073 = vunpack.c.h.b16 %v998
    %v1074 = vunpack.c.l.b16 %v999
    %v1075 = vunpack.c.h.b16 %v999
    %v1076 = vunpack.c.l.b16 %v1000
    %v1077 = vunpack.c.h.b16 %v1000
    %v1078 = vunpack.c.l.b16 %v1001
    %v1079 = vunpack.c.h.b16 %v1001
    %v1080 = vunpack.c.l.b16 %v1002
    %v1081 = vunpack.c.h.b16 %v1002
    %v1082 = vunpack.c.l.b16 %v1003
    %v1083 = vunpack.c.h.b16 %v1003
    %v1084 = vunpack.c.l.b16 %v1004
    %v1085 = vunpack.c.h.b16 %v1004
    %v1086 = vunpack.c.l.b16 %v1005
    %v1087 = vunpack.c.h.b16 %v1005
    %v1088 = vunpack.c.l.b16 %v1006
    %v1089 = vunpack.c.h.b16 %v1006
    %v1090 = vunpack.c.l.b16 %v1007
    %v1091 = vunpack.c.h.b16 %v1007
    %v1092 = vunpack.c.l.b16 %v1008
    %v1093 = vunpack.c.h.b16 %v1008
    %v1094 = vunpack.c.l.b16 %v1009
    %v1095 = vunpack.c.h.b16 %v1009
    %v1096 = vunpack.c.l.b16 %v1010
    %v1097 = vunpack.c.h.b16 %v1010
    %v1098 = vunpack.c.l.b16 %v1011
    %v1099 = vunpack.c.h.b16 %v1011
    %v1100 = vunpack.c.l.b16 %v1012
    %v1101 = vunpack.c.h.b16 %v1012
    %v1102 = vunpack.c.l.b16 %v1013
    %v1103 = vunpack.c.h.b16 %v1013
    %v1104 = vunpack.c.l.b16 %v1014
    %v1105 = vunpack.c.h.b16 %v1014
    %v1106 = vunpack.c.l.b16 %v1015
    %v1107 = vunpack.c.h.b16 %v1015
    %v1108 = vunpack.c.l.b16 %v1016
    %v1109 = vunpack.c.h.b16 %v1016
    %v1110 = vunpack.c.l.b16 %v1017
    %v1111 = vunpack.c.h.b16 %v1017
    %v1112 = vunpack.c.l.b16 %v1018
    %v1113 = vunpack.c.h.b16 %v1018
    %v1114 = vunpack.c.l.b16 %v1019
    %v1115 = vunpack.c.h.b16 %v1019
    %v1116 = vunpack.c.l.b16 %v1020
    %v1117 = vunpack.c.h.b16 %v1020
    %v1118 = vunpack.c.l.b16 %v1021
    %v1119 = vunpack.c.h.b16 %v1021
    %v1120 = vunpack.c.l.b16 %v1022
    %v1121 = vunpack.c.h.b16 %v1022
    %v1122 = vunpack.c.l.b16 %v1023
    %v1123 = vunpack.c.h.b16 %v1023
    %v1124 = vunpack.c.l.b16 %v1024
    %v1125 = vunpack.c.h.b16 %v1024
    %v1126 = vunpack.c.l.b16 %v1025
    %v1127 = vunpack.c.h.b16 %v1025
    %v1128 = vpack.c.b16 %v1066, %v1064
    %v1129 = vpack.c.b16 %v1067, %v1065
    %v1130 = vpack.c.b16 %v1070, %v1068
    %v1131 = vpack.c.b16 %v1071, %v1069
    %v1132 = vpack.c.b16 %v1074, %v1072
    %v1133 = vpack.c.b16 %v1075, %v1073
    %v1134 = vpack.c.b16 %v1078, %v1076
    %v1135 = vpack.c.b16 %v1079, %v1077
    %v1136 = vpack.c.b16 %v1082, %v1080
    %v1137 = vpack.c.b16 %v1083, %v1081
    %v1138 = vpack.c.b16 %v1086, %v1084
    %v1139 = vpack.c.b16 %v1087, %v1085
    %v1140 = vpack.c.b16 %v1090, %v1088
    %v1141 = vpack.c.b16 %v1091, %v1089
    %v1142 = vpack.c.b16 %v1094, %v1092
    %v1143 = vpack.c.b16 %v1095, %v1093
    %v1144 = vpack.c.b16 %v1098, %v1096
    %v1145 = vpack.c.b16 %v1099, %v1097
    %v1146 = vpack.c.b16 %v1102, %v1100
    %v1147 = vpack.c.b16 %v1103, %v1101
    %v1148 = vpack.c.b16 %v1106, %v1104
    %v1149 = vpack.c.b16 %v1107, %v1105
    %v1150 = vpack.c.b16 %v1110, %v1108
    %v1151 = vpack.c.b16 %v1111, %v1109
    %v1152 = vpack.c.b16 %v1114, %v1112
    %v1153 = vpack.c.b16 %v1115, %v1113
    %v1154 = vpack.c.b16 %v1118, %v1116
    %v1155 = vpack.c.b16 %v1119, %v1117
    %v1156 = vpack.c.b16 %v1122, %v1120
    %v1157 = vpack.c.b16 %v1123, %v1121
    %v1158 = vpack.c.b16 %v1126, %v1124
    %v1159 = vpack.c.b16 %v1127, %v1125
    %1192 = vmatpush.bf16.msra.mxu0 %v1142
    %1193 = vmatpush.bf16.msra.mxu0 %v1140
    %1194 = vmatpush.bf16.msra.mxu0 %v1138
    %1195 = vmatpush.bf16.msra.mxu0 %v1136
    %1196 = vmatpush.bf16.msra.mxu0 %v1134
    %1197 = vmatpush.bf16.msra.mxu0 %v1132
    %1198 = vmatpush.bf16.msra.mxu0 %v1130
    %1199 = vmatpush.bf16.msra.mxu0 %v1128
    %1200 = vmatmul.bf16.gmra.mxu0 %v992
    %v1201 = vpop.f32.mrf.mxu0
    %v1202 = vadd.f32 %v1028, %v1201
    %v1203 = vpop.f32.mrf.mxu0
    %1204 = vdwg.mxu0
    %1205 = vmatpush.bf16.msra.mxu0 %v1158
    %1206 = vmatpush.bf16.msra.mxu0 %v1156
    %1207 = vmatpush.bf16.msra.mxu0 %v1154
    %1208 = vmatpush.bf16.msra.mxu0 %v1152
    %1209 = vmatpush.bf16.msra.mxu0 %v1150
    %1210 = vmatpush.bf16.msra.mxu0 %v1148
    %1211 = vmatpush.bf16.msra.mxu0 %v1146
    %1212 = vmatpush.bf16.msra.mxu0 %v1144
    %1213 = vmatmul.bf16.gmra.mxu0 %v993
    %v1214 = vpop.f32.mrf.mxu0
    %v1215 = vadd.f32 %v1202, %v1214
    %v1216 = vpop.f32.mrf.mxu0
    %1217 = vdwg.mxu0
    %1218 = vmatpush.bf16.msra.mxu0 %v1143
    %1219 = vmatpush.bf16.msra.mxu0 %v1141
    %1220 = vmatpush.bf16.msra.mxu0 %v1139
    %1221 = vmatpush.bf16.msra.mxu0 %v1137
    %1222 = vmatpush.bf16.msra.mxu0 %v1135
    %1223 = vmatpush.bf16.msra.mxu0 %v1133
    %1224 = vmatpush.bf16.msra.mxu0 %v1131
    %1225 = vmatpush.bf16.msra.mxu0 %v1129
    %1226 = vmatmul.bf16.gmra.mxu0 %v992
    %v1227 = vpop.f32.mrf.mxu0
    %v1228 = vadd.f32 %v1029, %v1227
    %v1229 = vpop.f32.mrf.mxu0
    %1230 = vdwg.mxu0
    %1231 = vmatpush.bf16.msra.mxu0 %v1159
    %1232 = vmatpush.bf16.msra.mxu0 %v1157
    %1233 = vmatpush.bf16.msra.mxu0 %v1155
    %1234 = vmatpush.bf16.msra.mxu0 %v1153
    %1235 = vmatpush.bf16.msra.mxu0 %v1151
    %1236 = vmatpush.bf16.msra.mxu0 %v1149
    %1237 = vmatpush.bf16.msra.mxu0 %v1147
    %1238 = vmatpush.bf16.msra.mxu0 %v1145
    %1239 = vmatmul.bf16.gmra.mxu0 %v993
    %v1240 = vpop.f32.mrf.mxu0
    %v1241 = vadd.f32 %v1228, %v1240
    %v1242 = vpop.f32.mrf.mxu0
    %1243 = vdwg.mxu0
    %v1244 = vmax.f32 %v1215, 0.0
    %v1245 = vmax.f32 %v1241, 0.0
    %v1246 = vpack.c.bf16 %v1244, %v1244
    %v1247 = vpack.c.bf16 %v1245, %v1245
    %v1248 = vld [vmem:[#allocation10] sm:$0xf]
    %v1249 = vld [vmem:[#allocation10 + $0x4] sm:$0xf]
    %v1250 = vld [vmem:[#allocation10 + $0x8] sm:$0xf]
    %v1251 = vld [vmem:[#allocation10 + $0xc] sm:$0xf]
    %v1252 = vld [vmem:[#allocation10 + $0x10] sm:$0xf]
    %v1253 = vld [vmem:[#allocation10 + $0x14] sm:$0xf]
    %v1254 = vld [vmem:[#allocation10 + $0x18] sm:$0xf]
    %v1255 = vld [vmem:[#allocation10 + $0x1c] sm:$0xf]
    %v1256 = vld [vmem:[#allocation10 + $0x20] sm:$0xf]
    %v1257 = vld [vmem:[#allocation10 + $0x24] sm:$0xf]
    %v1258 = vld [vmem:[#allocation10 + $0x28] sm:$0xf]
    %v1259 = vld [vmem:[#allocation10 + $0x2c] sm:$0xf]
    %v1260 = vld [vmem:[#allocation10 + $0x30] sm:$0xf]
    %v1261 = vld [vmem:[#allocation10 + $0x34] sm:$0xf]
    %v1262 = vld [vmem:[#allocation10 + $0x38] sm:$0xf]
    %v1263 = vld [vmem:[#allocation10 + $0x3c] sm:$0xf]
    %v1264 = vld [vmem:[#allocation10 + $0x40] sm:$0xf]
    %v1265 = vld [vmem:[#allocation10 + $0x44] sm:$0xf]
    %v1266 = vld [vmem:[#allocation10 + $0x48] sm:$0xf]
    %v1267 = vld [vmem:[#allocation10 + $0x4c] sm:$0xf]
    %v1268 = vld [vmem:[#allocation10 + $0x50] sm:$0xf]
    %v1269 = vld [vmem:[#allocation10 + $0x54] sm:$0xf]
    %v1270 = vld [vmem:[#allocation10 + $0x58] sm:$0xf]
    %v1271 = vld [vmem:[#allocation10 + $0x5c] sm:$0xf]
    %v1272 = vld [vmem:[#allocation10 + $0x60] sm:$0xf]
    %v1273 = vld [vmem:[#allocation10 + $0x64] sm:$0xf]
    %v1274 = vld [vmem:[#allocation10 + $0x68] sm:$0xf]
    %v1275 = vld [vmem:[#allocation10 + $0x6c] sm:$0xf]
    %v1276 = vld [vmem:[#allocation10 + $0x70] sm:$0xf]
    %v1277 = vld [vmem:[#allocation10 + $0x74] sm:$0xf]
    %v1278 = vld [vmem:[#allocation10 + $0x78] sm:$0xf]
    %v1279 = vld [vmem:[#allocation10 + $0x7c] sm:$0xf]
    %v1280 = vld [vmem:[%s6] sm:$0x1]
    %v1282 = vperm.slane %v1280, 0
    %v1316 = vunpack.c.l.b16 %v1248
    %v1317 = vunpack.c.l.b16 %v1249
    %v1318 = vunpack.c.l.b16 %v1250
    %v1319 = vunpack.c.l.b16 %v1251
    %v1320 = vunpack.c.l.b16 %v1252
    %v1321 = vunpack.c.l.b16 %v1253
    %v1322 = vunpack.c.l.b16 %v1254
    %v1323 = vunpack.c.l.b16 %v1255
    %v1324 = vunpack.c.l.b16 %v1256
    %v1325 = vunpack.c.l.b16 %v1257
    %v1326 = vunpack.c.l.b16 %v1258
    %v1327 = vunpack.c.l.b16 %v1259
    %v1328 = vunpack.c.l.b16 %v1260
    %v1329 = vunpack.c.l.b16 %v1261
    %v1330 = vunpack.c.l.b16 %v1262
    %v1331 = vunpack.c.l.b16 %v1263
    %v1332 = vunpack.c.l.b16 %v1264
    %v1333 = vunpack.c.l.b16 %v1265
    %v1334 = vunpack.c.l.b16 %v1266
    %v1335 = vunpack.c.l.b16 %v1267
    %v1336 = vunpack.c.l.b16 %v1268
    %v1337 = vunpack.c.l.b16 %v1269
    %v1338 = vunpack.c.l.b16 %v1270
    %v1339 = vunpack.c.l.b16 %v1271
    %v1340 = vunpack.c.l.b16 %v1272
    %v1341 = vunpack.c.l.b16 %v1273
    %v1342 = vunpack.c.l.b16 %v1274
    %v1343 = vunpack.c.l.b16 %v1275
    %v1344 = vunpack.c.l.b16 %v1276
    %v1345 = vunpack.c.l.b16 %v1277
    %v1346 = vunpack.c.l.b16 %v1278
    %v1347 = vunpack.c.l.b16 %v1279
    %v1348 = vpack.c.b16 %v1317, %v1316
    %v1349 = vpack.c.b16 %v1319, %v1318
    %v1350 = vpack.c.b16 %v1321, %v1320
    %v1351 = vpack.c.b16 %v1323, %v1322
    %v1352 = vpack.c.b16 %v1325, %v1324
    %v1353 = vpack.c.b16 %v1327, %v1326
    %v1354 = vpack.c.b16 %v1329, %v1328
    %v1355 = vpack.c.b16 %v1331, %v1330
    %v1356 = vpack.c.b16 %v1333, %v1332
    %v1357 = vpack.c.b16 %v1335, %v1334
    %v1358 = vpack.c.b16 %v1337, %v1336
    %v1359 = vpack.c.b16 %v1339, %v1338
    %v1360 = vpack.c.b16 %v1341, %v1340
    %v1361 = vpack.c.b16 %v1343, %v1342
    %v1362 = vpack.c.b16 %v1345, %v1344
    %v1363 = vpack.c.b16 %v1347, %v1346
    %1380 = vmatpush.bf16.msra.mxu0 %v1355
    %1381 = vmatpush.bf16.msra.mxu0 %v1354
    %1382 = vmatpush.bf16.msra.mxu0 %v1353
    %1383 = vmatpush.bf16.msra.mxu0 %v1352
    %1384 = vmatpush.bf16.msra.mxu0 %v1351
    %1385 = vmatpush.bf16.msra.mxu0 %v1350
    %1386 = vmatpush.bf16.msra.mxu0 %v1349
    %1387 = vmatpush.bf16.msra.mxu0 %v1348
    %1388 = vmatmul.bf16.gmra.mxu0 %v1246
    %v1389 = vpop.f32.mrf.mxu0
    %v1390 = vadd.f32 %v1282, %v1389
    %v1391 = vpop.f32.mrf.mxu0
    %1392 = vdwg.mxu0
    %1393 = vmatpush.bf16.msra.mxu0 %v1363
    %1394 = vmatpush.bf16.msra.mxu0 %v1362
    %1395 = vmatpush.bf16.msra.mxu0 %v1361
    %1396 = vmatpush.bf16.msra.mxu0 %v1360
    %1397 = vmatpush.bf16.msra.mxu0 %v1359
    %1398 = vmatpush.bf16.msra.mxu0 %v1358
    %1399 = vmatpush.bf16.msra.mxu0 %v1357
    %1400 = vmatpush.bf16.msra.mxu0 %v1356
    %1401 = vmatmul.bf16.gmra.mxu0 %v1247
    %v1402 = vpop.f32.mrf.mxu0
    %v1403 = vadd.f32 %v1390, %v1402
    %v1404 = vpop.f32.mrf.mxu0
    %1405 = vdwg.mxu0
    %1406 = vst [vmem:[#allocation11] sm:$0xff] %v1403
    // Predicated region
    $region50: #{tpu_custom_call.1} parent=1 // pred_check
      _
    $region51: #{tpu_custom_call.1} parent=1 // pred_check_branch
      %1408 = sbr.rel (0) target = $region53
    $region52: #{tpu_custom_call.1} parent=1 // pred_region
      %1410 = vsyncadd [#allocation4], 0
      %s1412 = sshll.u32 [#allocation11], 4
      %s1413 = int_to_ptr.vmem [resolvable:$true] %s1412
      %s1414 = sshll.u32 %s7, 4
      %s1415 = int_to_ptr.hbm [resolvable:$true] %s1414
      %1417 = dma.vmem_to_hbm [thread:$0]  %s1413, 128, %s1415, [#allocation4]
    $region53: #{tpu_custom_call.1} parent=1 // pred_fallthru
      _
    // Predicated region
    $region54: #{tpu_custom_call.1} parent=1 // pred_check
      _
    $region55: #{tpu_custom_call.1} parent=1 // pred_check_branch
      %1419 = sbr.rel (0) target = $region57
    $region56: #{tpu_custom_call.1} parent=1 // pred_region
      %1421 = dma.done [#allocation4], 128
    $region57: #{tpu_custom_call.1} parent=1 // pred_fallthru
      _
    %1422 = vsyncpa [#allocation3], 1
    %1423 = vsyncpa [#allocation6], 1
    %1424 = vsyncpa [#allocation9], 1
    %1425 = vsyncpa [#allocation4], 1

</llo_original>
